<compile_context>
chip_gen: v5e
topology: v5e:2x2
jax: 0.10.0
libtpu: 0.0.40
codegen_flags: <defaults>
</compile_context>

<pallas_src>
import functools

import jax
import jax.numpy as jnp
from jax.experimental import pallas as pl
from jax.experimental.pallas import tpu as pltpu


def _round_up(n, m):
    return ((n + m - 1) // m) * m


# ---------------------------------------------------------------------------
# Phase 1: per-node projections (computed once per node, not per edge)
# ---------------------------------------------------------------------------
def node_proj_kernel(x_ref, win_ref, wout_ref, fi_ref, fj_ref):
    xb = x_ref[...]
    fi = jnp.dot(xb, win_ref[...], preferred_element_type=jnp.float32)
    fj = jnp.dot(xb, wout_ref[...], preferred_element_type=jnp.float32)
    fi_ref[...] = fi.astype(fi_ref.dtype)
    fj_ref[...] = fj.astype(fj_ref.dtype)


# ---------------------------------------------------------------------------
# Phase 2: fused edge transform + MLP, tiled over edges
# ---------------------------------------------------------------------------
def edge_mlp_kernel(edge_ref, fi_ref, fj_ref,
                    we_ref, be_ref, wh_ref, bh_ref, wf_ref, bf_ref,
                    o_ref, *, n_layers):
    cd = we_ref.dtype  # MXU operand dtype (f32 or bf16)

    # f_ij + f_i[row] + f_j[col]; accumulation and element-wise math in f32
    f = jnp.dot(edge_ref[...], we_ref[...], preferred_element_type=jnp.float32)
    f = f + be_ref[...] + fi_ref[...].astype(jnp.float32) + fj_ref[...].astype(jnp.float32)
    h = jnp.maximum(f, 0.0)  # F.relu

    # MLP: n_layers x (Linear(H,H) + ReLU), then final Linear(H,H)
    for layer in range(n_layers):  # static unroll, n_layers is small
        h = jnp.dot(h.astype(cd), wh_ref[layer],
                    preferred_element_type=jnp.float32) + bh_ref[layer]
        h = jnp.maximum(h, 0.0)
    out = jnp.dot(h.astype(cd), wf_ref[...],
                  preferred_element_type=jnp.float32) + bf_ref[...]
    o_ref[...] = out.astype(o_ref.dtype)


def edge_model_forward(x, edge_attr, edge_index, params, *, n_layers,
                       tile_e=256, tile_n=256, compute_dtype=jnp.float32):
    N, H = x.shape
    E, He = edge_attr.shape
    assert He == H

    we, be, win, wout, wh, bh, wf, bf = params
    cd = compute_dtype
    we_c, win_c, wout_c = we.astype(cd), win.astype(cd), wout.astype(cd)
    wh_c, wf_c = wh.astype(cd), wf.astype(cd)
    be2 = be.reshape(1, H).astype(jnp.float32)
    bh3 = bh.reshape(n_layers, 1, H).astype(jnp.float32)
    bf2 = bf.reshape(1, H).astype(jnp.float32)

    # ----- per-node projections (hoisted) -----
    tn = min(tile_n, _round_up(N, 8))
    n_pad = _round_up(N, tn)
    x_p = jnp.pad(x.astype(cd), ((0, n_pad - N), (0, 0)))

    node_tile = pl.BlockSpec((tn, H), lambda i: (i, 0))
    full_w = pl.BlockSpec((H, H), lambda i: (0, 0))
    fi, fj = pl.pallas_call(
        node_proj_kernel,
        out_shape=(jax.ShapeDtypeStruct((n_pad, H), cd),
                   jax.ShapeDtypeStruct((n_pad, H), cd)),
        grid_spec=pltpu.PrefetchScalarGridSpec(
            num_scalar_prefetch=0,
            grid=(n_pad // tn,),
            in_specs=[node_tile, full_w, full_w],
            out_specs=(node_tile, node_tile),
        ),
        compiler_params=pltpu.CompilerParams(
            dimension_semantics=("parallel",),
            vmem_limit_bytes=32 * 1024 * 1024),
    )(x_p, win_c, wout_c)

    # ----- gather projected node features per edge (JAX glue) -----
    row, col = edge_index[0], edge_index[1]
    fi_row = fi[:N][row]
    fj_col = fj[:N][col]

    # ----- fused edge + MLP kernel, tiled over edges (ragged E handled by pad) -----
    te = min(tile_e, _round_up(E, 8))
    e_pad = _round_up(E, te)
    pe = e_pad - E
    edge_p = jnp.pad(edge_attr.astype(cd), ((0, pe), (0, 0)))
    fi_p = jnp.pad(fi_row, ((0, pe), (0, 0)))
    fj_p = jnp.pad(fj_col, ((0, pe), (0, 0)))

    edge_tile = pl.BlockSpec((te, H), lambda i: (i, 0))
    bias2 = pl.BlockSpec((1, H), lambda i: (0, 0))
    kernel = functools.partial(edge_mlp_kernel, n_layers=n_layers)

    out = pl.pallas_call(
        kernel,
        out_shape=jax.ShapeDtypeStruct((e_pad, H), jnp.float32),
        grid_spec=pltpu.PrefetchScalarGridSpec(
            num_scalar_prefetch=0,
            grid=(e_pad // te,),
            in_specs=[
                edge_tile,                                            # edge_attr tile
                edge_tile,                                            # f_i[row] tile
                edge_tile,                                            # f_j[col] tile
                full_w,                                               # W_edge    [H, H]
                bias2,                                                # b_edge    [1, H]
                pl.BlockSpec((n_layers, H, H), lambda i: (0, 0, 0)),  # MLP hidden W
                pl.BlockSpec((n_layers, 1, H), lambda i: (0, 0, 0)),  # MLP hidden b
                full_w,                                               # MLP final W
                bias2,                                                # MLP final b
            ],
            out_specs=pl.BlockSpec((te, H), lambda i: (i, 0)),
        ),
        compiler_params=pltpu.CompilerParams(
            dimension_semantics=("parallel",),
            vmem_limit_bytes=32 * 1024 * 1024),
    )(edge_p, fi_p, fj_p, we_c, be2, wh_c, bh3, wf_c, bf2)

    return out[:E]


def init_params(key, hidden_dim, n_layers):
    """Deterministic synthetic parameters. Linear weights stored as [in, out]."""
    ks = jax.random.split(key, 8)
    s = 1.0 / jnp.sqrt(hidden_dim)
    we = jax.random.uniform(ks[0], (hidden_dim, hidden_dim), jnp.float32, -s, s)
    be = jax.random.uniform(ks[1], (hidden_dim,), jnp.float32, -s, s)
    win = jax.random.uniform(ks[2], (hidden_dim, hidden_dim), jnp.float32, -s, s)
    wout = jax.random.uniform(ks[3], (hidden_dim, hidden_dim), jnp.float32, -s, s)
    wh = jax.random.uniform(ks[4], (n_layers, hidden_dim, hidden_dim), jnp.float32, -s, s)
    bh = jax.random.uniform(ks[5], (n_layers, hidden_dim), jnp.float32, -s, s)
    wf = jax.random.uniform(ks[6], (hidden_dim, hidden_dim), jnp.float32, -s, s)
    bf = jax.random.uniform(ks[7], (hidden_dim,), jnp.float32, -s, s)
    return we, be, win, wout, wh, bh, wf, bf


def edge_model_reference(x, edge_attr, edge_index, params, *, n_layers):
    """Plain-JAX reference matching the PyTorch forward."""
    we, be, win, wout, wh, bh, wf, bf = params
    f_ij = edge_attr @ we + be
    f_i = x @ win
    f_j = x @ wout
    row, col = edge_index[0], edge_index[1]
    h = jnp.maximum(f_ij + f_i[row] + f_j[col], 0.0)
    for l in range(n_layers):
        h = jnp.maximum(h @ wh[l] + bh[l], 0.0)
    return h @ wf + bf


if __name__ == "__main__":
    hidden_dim = 32
    n_layers = 2
    num_nodes = 16
    num_edges = 64

    key = jax.random.PRNGKey(0)
    k_x, k_e, k_idx, k_p = jax.random.split(key, 4)

    x = jax.random.normal(k_x, (num_nodes, hidden_dim), jnp.float32)
    edge_attr = jax.random.normal(k_e, (num_edges, hidden_dim), jnp.float32)
    edge_index = jax.random.randint(k_idx, (2, num_edges), 0, num_nodes, jnp.int32)
    params = init_params(k_p, hidden_dim, n_layers)

    ref = edge_model_reference(x, edge_attr, edge_index, params, n_layers=n_layers)

    # f32 path: exact match against reference.
    out = edge_model_forward(x, edge_attr, edge_index, params, n_layers=n_layers,
                             compute_dtype=jnp.float32)
    out = jax.block_until_ready(out)
    assert out.shape == (num_edges, hidden_dim)
    assert jnp.allclose(out, ref, atol=1e-5, rtol=1e-5), "f32 Pallas output mismatch"

    # bf16 MXU path (v6e/v7x perf mode): loose tolerance vs f32 reference.
    out_bf16 = edge_model_forward(x, edge_attr, edge_index, params, n_layers=n_layers,
                                  compute_dtype=jnp.bfloat16)
    out_bf16 = jax.block_until_ready(out_bf16)
    assert bool(jnp.all(jnp.isfinite(out_bf16)))
    assert jnp.allclose(out_bf16, ref, atol=2e-1, rtol=2e-1), "bf16 Pallas output mismatch"

    print("KERNEL_OK")
</pallas_src>

<mosaic_0001>
module attributes {stable_mosaic.version = 11 : i64} {
  func.func @node_proj_kernel(%arg0: i32, %arg1: memref<16x32xf32, #tpu.memory_space<vmem>>, %arg2: memref<32x32xf32, #tpu.memory_space<vmem>>, %arg3: memref<32x32xf32, #tpu.memory_space<vmem>>, %arg4: memref<16x32xf32, #tpu.memory_space<vmem>>, %arg5: memref<16x32xf32, #tpu.memory_space<vmem>>) attributes {dimension_semantics = [#tpu.dimension_semantics<parallel>], iteration_bounds = array<i64: 1>, scalar_prefetch = 0 : i64, scratch_operands = 0 : i64, tpu.core_type = #tpu.core_type<tc>, window_params = [{transform_indices = @transform_0, window_bounds = array<i64: 16, 32>}, {pipeline_mode = #tpu.pipeline_mode<synchronous>, transform_indices = @transform_1, window_bounds = array<i64: 32, 32>}, {pipeline_mode = #tpu.pipeline_mode<synchronous>, transform_indices = @transform_2, window_bounds = array<i64: 32, 32>}, {transform_indices = @transform_3, window_bounds = array<i64: 16, 32>}, {transform_indices = @transform_4, window_bounds = array<i64: 16, 32>}]} {
    %c0 = arith.constant 0 : index
    %c0_0 = arith.constant 0 : index
    %0 = vector.load %arg1[%c0, %c0_0] : memref<16x32xf32, #tpu.memory_space<vmem>>, vector<16x32xf32>
    %c0_1 = arith.constant 0 : index
    %c0_2 = arith.constant 0 : index
    %1 = vector.load %arg2[%c0_1, %c0_2] : memref<32x32xf32, #tpu.memory_space<vmem>>, vector<32x32xf32>
    %cst = arith.constant dense<0.000000e+00> : vector<16x32xf32>
    %2 = tpu.matmul %0, %1, %cst {dimension_numbers = #tpu.dot_dimension_numbers<[1], [0], [0], [1], [0, 0, 1, 1], [], []>} : vector<16x32xf32>, vector<32x32xf32>, vector<16x32xf32> -> vector<16x32xf32>
    %c0_3 = arith.constant 0 : index
    %c0_4 = arith.constant 0 : index
    %3 = vector.load %arg3[%c0_3, %c0_4] : memref<32x32xf32, #tpu.memory_space<vmem>>, vector<32x32xf32>
    %cst_5 = arith.constant dense<0.000000e+00> : vector<16x32xf32>
    %4 = tpu.matmul %0, %3, %cst_5 {dimension_numbers = #tpu.dot_dimension_numbers<[1], [0], [0], [1], [0, 0, 1, 1], [], []>} : vector<16x32xf32>, vector<32x32xf32>, vector<16x32xf32> -> vector<16x32xf32>
    %c0_6 = arith.constant 0 : index
    %c0_7 = arith.constant 0 : index
    %5 = vector.load %arg4[%c0_6, %c0_7] : memref<16x32xf32, #tpu.memory_space<vmem>>, vector<16x32xf32>
    tpu.vector_store %arg4[%c0_6, %c0_7], %2 {strides = array<i32>} : memref<16x32xf32, #tpu.memory_space<vmem>>, vector<16x32xf32>,
    %c0_8 = arith.constant 0 : index
    %c0_9 = arith.constant 0 : index
    %6 = vector.load %arg5[%c0_8, %c0_9] : memref<16x32xf32, #tpu.memory_space<vmem>>, vector<16x32xf32>
    tpu.vector_store %arg5[%c0_8, %c0_9], %4 {strides = array<i32>} : memref<16x32xf32, #tpu.memory_space<vmem>>, vector<16x32xf32>,
    return
  }
  func.func @transform_0(%arg0: i32) -> (i32, i32) {
    %c0_i32 = arith.constant 0 : i32
    %c0_i32_0 = arith.constant 0 : i32
    return %arg0, %c0_i32 : i32, i32
  }
  func.func @transform_1(%arg0: i32) -> (i32, i32) {
    %c0_i32 = arith.constant 0 : i32
    %c0_i32_0 = arith.constant 0 : i32
    %c0_i32_1 = arith.constant 0 : i32
    return %c0_i32, %c0_i32_0 : i32, i32
  }
  func.func @transform_2(%arg0: i32) -> (i32, i32) {
    %c0_i32 = arith.constant 0 : i32
    %c0_i32_0 = arith.constant 0 : i32
    %c0_i32_1 = arith.constant 0 : i32
    return %c0_i32, %c0_i32_0 : i32, i32
  }
  func.func @transform_3(%arg0: i32) -> (i32, i32) {
    %c0_i32 = arith.constant 0 : i32
    %c0_i32_0 = arith.constant 0 : i32
    return %arg0, %c0_i32 : i32, i32
  }
  func.func @transform_4(%arg0: i32) -> (i32, i32) {
    %c0_i32 = arith.constant 0 : i32
    %c0_i32_0 = arith.constant 0 : i32
    return %arg0, %c0_i32 : i32, i32
  }
}

</mosaic_0001>

<llo_original>
// kernel: tpu_custom_call.1
$region0: #{tpu_custom_call.1}
  #allocation0 [shape = 'u32[]', space=smem, size = 0x4, offset = 0x4, fixed_abs, tag = 'smem constant byte address 0x4 - core index']
  #allocation1 [shape = 'u32[72,128]{1,0:T(1,128)}', space=vmem, size = 0x9000, scoped, tag = 'internal scratch']
  %s0 = inlined_call_operand.hbm [shape: f32[16,32], index: 0, kind: input, shape index: {}]
  %s1 = inlined_call_operand.hbm [shape: f32[32,32], index: 1, kind: input, shape index: {}]
  %s2 = inlined_call_operand.hbm [shape: f32[32,32], index: 2, kind: input, shape index: {}]
  %s3 = inlined_call_operand.hbm [shape: f32[16,32], index: 3, kind: output, shape index: {0}]
  %s4 = inlined_call_operand.hbm [shape: f32[16,32], index: 4, kind: output, shape index: {1}]
  %5 = xla_tuple %s3, %s4
  %s6 = sld [smem:[#allocation0]]
  $region42: #{tpu_custom_call.1} parent=0
    _
  %s8 = ssub.s32 1, %s6
  %s9 = scalar_select 0, %s8, %s6
  $region1: #{tpu_custom_call.1} parent=0
    #allocation2 [shape = 'u8[8192]{0}', space=vmem, size = 0x2000, scoped, tag = 'input window, operand 0, single buffered']
    #allocation3 [shape = 's32[1]{0}', space=sflag, size = 0x4, scoped, tag = 'scoped memory for tpu_custom_call.1']
    #allocation4 [shape = 's32[1]{0}', space=sflag, size = 0x4, scoped, tag = 'scoped memory for tpu_custom_call.1']
    #allocation5 [shape = 'u8[16384]{0}', space=vmem, size = 0x4000, scoped, tag = 'input window, operand 1, single buffered']
    #allocation6 [shape = 's32[1]{0}', space=sflag, size = 0x4, scoped, tag = 'scoped memory for tpu_custom_call.1']
    #allocation7 [shape = 'u8[16384]{0}', space=vmem, size = 0x4000, scoped, tag = 'input window, operand 2, single buffered']
    #allocation8 [shape = 'u8[8192]{0}', space=vmem, size = 0x2000, scoped, tag = 'output window, operand 0, single buffered']
    #allocation9 [shape = 'u8[8192]{0}', space=vmem, size = 0x2000, scoped, tag = 'output window, operand 1, single buffered']
    #allocation10 [shape = 's32[1]{0}', space=sflag, size = 0x4, scoped, tag = 'scoped memory for tpu_custom_call.1']
    %10 = vsyncpa [#allocation3], 0
    %11 = vsyncpa [#allocation6], 0
    %12 = vsyncpa [#allocation4], 0
    %13 = vsyncpa [#allocation10], 0
    // Predicated region
    $region2: #{tpu_custom_call.1} parent=1 // pred_check
      _
    $region3: #{tpu_custom_call.1} parent=1 // pred_check_branch
      %15 = sbr.rel (0) target = $region5
    $region4: #{tpu_custom_call.1} parent=1 // pred_region
      %17 = vsyncadd [#allocation3], 0
      %s18 = sshll.u32 %s0, 4
      %s19 = int_to_ptr.hbm [resolvable:$true] %s18
      %s20 = sshll.u32 [#allocation2], 4
      %s21 = int_to_ptr.vmem [resolvable:$true] %s20
      %26 = dma.hbm_to_vmem [thread:$0]  %s19, 256, %s21, [#allocation3], 128, 128, 8
    $region5: #{tpu_custom_call.1} parent=1 // pred_fallthru
      _
    // Predicated region
    $region6: #{tpu_custom_call.1} parent=1 // pred_check
      _
    $region7: #{tpu_custom_call.1} parent=1 // pred_check_branch
      %28 = sbr.rel (0) target = $region9
    $region8: #{tpu_custom_call.1} parent=1 // pred_region
      %30 = vsyncadd [#allocation6], 0
      %s31 = sshll.u32 %s1, 4
      %s32 = int_to_ptr.hbm [resolvable:$true] %s31
      %s33 = sshll.u32 [#allocation5], 4
      %s34 = int_to_ptr.vmem [resolvable:$true] %s33
      %39 = dma.hbm_to_vmem [thread:$0]  %s32, 512, %s34, [#allocation6], 128, 128, 8
    $region9: #{tpu_custom_call.1} parent=1 // pred_fallthru
      _
    // Predicated region
    $region10: #{tpu_custom_call.1} parent=1 // pred_check
      _
    $region11: #{tpu_custom_call.1} parent=1 // pred_check_branch
      %41 = sbr.rel (0) target = $region13
    $region12: #{tpu_custom_call.1} parent=1 // pred_region
      %43 = vsyncadd [#allocation6], 0
      %s44 = sshll.u32 %s2, 4
      %s45 = int_to_ptr.hbm [resolvable:$true] %s44
      %s46 = sshll.u32 [#allocation7], 4
      %s47 = int_to_ptr.vmem [resolvable:$true] %s46
      %52 = dma.hbm_to_vmem [thread:$0]  %s45, 512, %s47, [#allocation6], 128, 128, 8
    $region13: #{tpu_custom_call.1} parent=1 // pred_fallthru
      _
    // Predicated region
    $region14: #{tpu_custom_call.1} parent=1 // pred_check
      _
    $region15: #{tpu_custom_call.1} parent=1 // pred_check_branch
      %54 = sbr.rel (0) target = $region17
    $region16: #{tpu_custom_call.1} parent=1 // pred_region
      %56 = dma.done [#allocation3], 256
    $region17: #{tpu_custom_call.1} parent=1 // pred_fallthru
      _
    // Predicated region
    $region18: #{tpu_custom_call.1} parent=1 // pred_check
      _
    $region19: #{tpu_custom_call.1} parent=1 // pred_check_branch
      %58 = sbr.rel (0) target = $region21
    $region20: #{tpu_custom_call.1} parent=1 // pred_region
      %60 = dma.done [#allocation6], 512
    $region21: #{tpu_custom_call.1} parent=1 // pred_fallthru
      _
    // Predicated region
    $region22: #{tpu_custom_call.1} parent=1 // pred_check
      _
    $region23: #{tpu_custom_call.1} parent=1 // pred_check_branch
      %62 = sbr.rel (0) target = $region25
    $region24: #{tpu_custom_call.1} parent=1 // pred_region
      %64 = dma.done [#allocation6], 512
    $region25: #{tpu_custom_call.1} parent=1 // pred_fallthru
      _
    %v65 = vld [vmem:[#allocation2] sm:$0xff]
    %v66 = vld [vmem:[#allocation2 + $0x8] sm:$0xff]
    %v67 = vld [vmem:[#allocation5] sm:$0xff]
    %v68 = vld [vmem:[#allocation5 + $0x8] sm:$0xff]
    %v69 = vld [vmem:[#allocation5 + $0x10] sm:$0xff]
    %v70 = vld [vmem:[#allocation5 + $0x18] sm:$0xff]
    %vm71 = vcmask 261120
    %v73 = vsel %vm71, %v65, 0
    %v76 = vsel %vm71, %v66, 0
    %78 = vmatpush.msra.mxu0 0.0
    %79 = vmatpush.msra.mxu0 0.0
    %80 = vmatpush.msra.mxu0 0.0
    %81 = vmatpush.msra.mxu0 0.0
    %82 = vmatpush.msra.mxu0 0.0
    %83 = vmatpush.msra.mxu0 0.0
    %84 = vmatpush.msra.mxu0 0.0
    %85 = vmatpush.msra.mxu0 0.0
    %86 = vmatpush.msra.mxu0 0.0
    %87 = vmatpush.msra.mxu0 0.0
    %88 = vmatpush.msra.mxu0 0.0
    %89 = vmatpush.msra.mxu0 0.0
    %90 = vmatpush.msra.mxu0 %v70
    %91 = vmatpush.msra.mxu0 %v69
    %92 = vmatpush.msra.mxu0 %v68
    %93 = vmatpush.msra.mxu0 %v67
    %94 = vmatmul.f32.gmra.mxu0 %v73
    %v95 = vpop.f32.mrf.mxu0
    %v96 = vadd.f32 0.0, %v95
    %97 = vmatmul.f32.gmra.mxu0 %v76
    %v98 = vpop.f32.mrf.mxu0
    %v99 = vadd.f32 0.0, %v98
    %100 = vdwg.mxu0
    %v101 = vld [vmem:[#allocation7] sm:$0xff]
    %v102 = vld [vmem:[#allocation7 + $0x8] sm:$0xff]
    %v103 = vld [vmem:[#allocation7 + $0x10] sm:$0xff]
    %v104 = vld [vmem:[#allocation7 + $0x18] sm:$0xff]
    %105 = vmatpush.msra.mxu0 0.0
    %106 = vmatpush.msra.mxu0 0.0
    %107 = vmatpush.msra.mxu0 0.0
    %108 = vmatpush.msra.mxu0 0.0
    %109 = vmatpush.msra.mxu0 0.0
    %110 = vmatpush.msra.mxu0 0.0
    %111 = vmatpush.msra.mxu0 0.0
    %112 = vmatpush.msra.mxu0 0.0
    %113 = vmatpush.msra.mxu0 0.0
    %114 = vmatpush.msra.mxu0 0.0
    %115 = vmatpush.msra.mxu0 0.0
    %116 = vmatpush.msra.mxu0 0.0
    %117 = vmatpush.msra.mxu0 %v104
    %118 = vmatpush.msra.mxu0 %v103
    %119 = vmatpush.msra.mxu0 %v102
    %120 = vmatpush.msra.mxu0 %v101
    %121 = vmatmul.f32.gmra.mxu0 %v73
    %v122 = vpop.f32.mrf.mxu0
    %v123 = vadd.f32 0.0, %v122
    %124 = vmatmul.f32.gmra.mxu0 %v76
    %v125 = vpop.f32.mrf.mxu0
    %v126 = vadd.f32 0.0, %v125
    %127 = vdwg.mxu0
    %128 = vst.msk [vmem:[#allocation8] sm:$0xff] %vm71, %v96
    %129 = vst.msk [vmem:[#allocation8 + $0x8] sm:$0xff] %vm71, %v99
    %130 = vst.msk [vmem:[#allocation9] sm:$0xff] %vm71, %v123
    %131 = vst.msk [vmem:[#allocation9 + $0x8] sm:$0xff] %vm71, %v126
    // Predicated region
    $region26: #{tpu_custom_call.1} parent=1 // pred_check
      _
    $region27: #{tpu_custom_call.1} parent=1 // pred_check_branch
      %133 = sbr.rel (0) target = $region29
    $region28: #{tpu_custom_call.1} parent=1 // pred_region
      %135 = vsyncadd [#allocation4], 0
      %s136 = sshll.u32 [#allocation8], 4
      %s137 = int_to_ptr.vmem [resolvable:$true] %s136
      %s138 = sshll.u32 %s3, 4
      %s139 = int_to_ptr.hbm [resolvable:$true] %s138
      %144 = dma.vmem_to_hbm [thread:$0]  %s137, 256, %s139, [#allocation4], 128, 128, 8
    $region29: #{tpu_custom_call.1} parent=1 // pred_fallthru
      _
    // Predicated region
    $region30: #{tpu_custom_call.1} parent=1 // pred_check
      _
    $region31: #{tpu_custom_call.1} parent=1 // pred_check_branch
      %146 = sbr.rel (0) target = $region33
    $region32: #{tpu_custom_call.1} parent=1 // pred_region
      %148 = vsyncadd [#allocation10], 0
      %s149 = sshll.u32 [#allocation9], 4
      %s150 = int_to_ptr.vmem [resolvable:$true] %s149
      %s151 = sshll.u32 %s4, 4
      %s152 = int_to_ptr.hbm [resolvable:$true] %s151
      %157 = dma.vmem_to_hbm [thread:$0]  %s150, 256, %s152, [#allocation10], 128, 128, 8
    $region33: #{tpu_custom_call.1} parent=1 // pred_fallthru
      _
    // Predicated region
    $region34: #{tpu_custom_call.1} parent=1 // pred_check
      _
    $region35: #{tpu_custom_call.1} parent=1 // pred_check_branch
      %159 = sbr.rel (0) target = $region37
    $region36: #{tpu_custom_call.1} parent=1 // pred_region
      %161 = dma.done [#allocation4], 256
    $region37: #{tpu_custom_call.1} parent=1 // pred_fallthru
      _
    // Predicated region
    $region38: #{tpu_custom_call.1} parent=1 // pred_check
      _
    $region39: #{tpu_custom_call.1} parent=1 // pred_check_branch
      %163 = sbr.rel (0) target = $region41
    $region40: #{tpu_custom_call.1} parent=1 // pred_region
      %165 = dma.done [#allocation10], 256
    $region41: #{tpu_custom_call.1} parent=1 // pred_fallthru
      _
    %166 = vsyncpa [#allocation3], 1
    %167 = vsyncpa [#allocation6], 1
    %168 = vsyncpa [#allocation4], 1
    %169 = vsyncpa [#allocation10], 1

</llo_original>
